<compile_context>
chip_gen: v5e
topology: v5e:2x2
jax: 0.10.0
libtpu: 0.0.40
codegen_flags: <defaults>
</compile_context>

<pallas_src>
import functools
import math

import jax
import jax.numpy as jnp
import numpy as np
from jax.experimental import pallas as pl
from jax.experimental.pallas import tpu as pltpu


def _round_up(x, m):
    return (x + m - 1) // m * m


# ----------------------------------------------------------------------------
# Pallas kernels
# ----------------------------------------------------------------------------
def _matmul_bias_kernel(x_ref, w_ref, b_ref, o_ref):
    """o = x @ w + b  (bf16 MXU inputs, f32 accumulate). Hoisted x@W_ih GEMM."""
    o_ref[...] = (
        jnp.dot(x_ref[...].astype(jnp.bfloat16), w_ref[...],
                preferred_element_type=jnp.float32)
        + b_ref[...]
    )


def _bilstm_layer_kernel(lens_ref, gin_ref, whh_ref, out_ref, *, hidden_p, t_eff):
    """One bi-LSTM layer; grid=(2,) over directions (0=fwd, 1=bwd).

    lens_ref : [B, 1] int32            valid length per sequence
    gin_ref  : [T, B, 4*Hp] f32        precomputed x@W_ih + b for this direction
    whh_ref  : [1, Hp, 4*Hp] bf16      recurrent weight (gate order i, f, g, o)
    out_ref  : [T, B, Hp]  f32         this direction's hidden states
    """
    d = pl.program_id(0)                      # 0 = forward, 1 = backward
    B = out_ref.shape[1]
    lens = lens_ref[...]                      # [B, 1] int32
    whh = whh_ref[0]                          # [Hp, 4*Hp] bf16 (loop-invariant)

    def step(s, carry):
        h, c = carry
        time = jnp.where(d == 0, s, t_eff - 1 - s)

        gates = gin_ref[time] + jnp.dot(
            h.astype(jnp.bfloat16), whh,
            preferred_element_type=jnp.float32)               # [B, 4*Hp]

        i = jax.nn.sigmoid(gates[:, 0 * hidden_p:1 * hidden_p])
        f = jax.nn.sigmoid(gates[:, 1 * hidden_p:2 * hidden_p])
        g = jnp.tanh(gates[:, 2 * hidden_p:3 * hidden_p])
        o = jax.nn.sigmoid(gates[:, 3 * hidden_p:4 * hidden_p])

        c_new = f * c + i * g
        h_new = o * jnp.tanh(c_new)

        # Packed-sequence semantics: state advances only where time < len.
        valid = lens > time                                    # [B, 1] bool
        h = jnp.where(valid, h_new, h)
        c = jnp.where(valid, c_new, c)

        out_ref[time] = h
        return h, c

    h0 = jnp.zeros((B, hidden_p), jnp.float32)
    c0 = jnp.zeros((B, hidden_p), jnp.float32)
    jax.lax.fori_loop(0, t_eff, step, (h0, c0), unroll=(t_eff <= 32))


def _head_kernel(x_ref, w1_ref, b1_ref, w2_ref, b2_ref, o_ref):
    """tanh -> Linear(2H,H) -> tanh -> (dropout=id) -> Linear(H,C). Row-tiled."""
    h0 = jnp.tanh(x_ref[...])
    h1 = jnp.tanh(
        jnp.dot(h0.astype(jnp.bfloat16), w1_ref[...],
                preferred_element_type=jnp.float32) + b1_ref[...])
    o_ref[...] = (
        jnp.dot(h1.astype(jnp.bfloat16), w2_ref[...],
                preferred_element_type=jnp.float32) + b2_ref[...])


# ----------------------------------------------------------------------------
# pallas_call wrappers
# ----------------------------------------------------------------------------
def _run_linear(x, w, b):
    """x:[M,K] f32, w:[K,N] bf16, b:[1,N] f32 -> [M,N] f32, tiled over rows."""
    M, K = x.shape
    N = w.shape[1]
    TM = min(256, _round_up(M, 8))
    M_pad = _round_up(M, TM)
    if M_pad != M:
        x = jnp.pad(x, ((0, M_pad - M), (0, 0)))
    out = pl.pallas_call(
        _matmul_bias_kernel,
        out_shape=jax.ShapeDtypeStruct((M_pad, N), jnp.float32),
        grid=(M_pad // TM,),
        in_specs=[
            pl.BlockSpec((TM, K), lambda i: (i, 0)),
            pl.BlockSpec((K, N), lambda i: (0, 0)),
            pl.BlockSpec((1, N), lambda i: (0, 0)),
        ],
        out_specs=pl.BlockSpec((TM, N), lambda i: (i, 0)),
        compiler_params=pltpu.CompilerParams(dimension_semantics=("parallel",)),
    )(x, w, b)
    return out[:M] if M_pad != M else out


def _run_bilstm(lens_b1, gin, whh, hidden_p, t_eff):
    """gin:[T,B,8*Hp] f32, whh:[2,Hp,4*Hp] bf16 -> [T,B,2*Hp] f32."""
    B = gin.shape[1]
    kernel = functools.partial(_bilstm_layer_kernel, hidden_p=hidden_p, t_eff=t_eff)
    return pl.pallas_call(
        kernel,
        out_shape=jax.ShapeDtypeStruct((t_eff, B, 2 * hidden_p), jnp.float32),
        grid=(2,),
        in_specs=[
            pl.BlockSpec((B, 1), lambda d: (0, 0)),                          # lens
            pl.BlockSpec((t_eff, B, 4 * hidden_p), lambda d: (0, 0, d)),     # gates_in
            pl.BlockSpec((1, hidden_p, 4 * hidden_p), lambda d: (d, 0, 0)),  # W_hh
        ],
        out_specs=pl.BlockSpec((t_eff, B, hidden_p), lambda d: (0, 0, d)),
        compiler_params=pltpu.CompilerParams(dimension_semantics=("parallel",)),
    )(lens_b1, gin, whh)


def _run_head(x, w1, b1, w2, b2, num_classes):
    N, D2 = x.shape
    Hp = w1.shape[1]
    Cp = w2.shape[1]
    TN = min(256, _round_up(N, 8))
    N_pad = _round_up(N, TN)
    if N_pad != N:
        x = jnp.pad(x, ((0, N_pad - N), (0, 0)))
    out = pl.pallas_call(
        _head_kernel,
        out_shape=jax.ShapeDtypeStruct((N_pad, Cp), jnp.float32),
        grid=(N_pad // TN,),
        in_specs=[
            pl.BlockSpec((TN, D2), lambda i: (i, 0)),
            pl.BlockSpec((D2, Hp), lambda i: (0, 0)),
            pl.BlockSpec((1, Hp), lambda i: (0, 0)),
            pl.BlockSpec((Hp, Cp), lambda i: (0, 0)),
            pl.BlockSpec((1, Cp), lambda i: (0, 0)),
        ],
        out_specs=pl.BlockSpec((TN, Cp), lambda i: (i, 0)),
        compiler_params=pltpu.CompilerParams(dimension_semantics=("parallel",)),
    )(x, w1, b1, w2, b2)
    return out[:N, :num_classes]


# ----------------------------------------------------------------------------
# Module forward
# ----------------------------------------------------------------------------
def lstm_module_forward(params, sen_embeddings, sen_lens):
    """sen_embeddings: [B, T, input_size] f32, sen_lens: static numpy int [B].
    Returns [sum(sen_lens), num_of_classes] f32 (same semantics as the torch module)."""
    B, T, _ = sen_embeddings.shape
    Hp = params["hidden_pad"]
    lens_np = np.asarray(sen_lens, dtype=np.int32)
    t_eff = int(lens_np.max())                       # pad_packed_sequence length
    lens_b1 = jnp.asarray(lens_np).reshape(B, 1)

    # [B, T, D] -> [T_eff, B, D]; keep [T, B, .] layout through the whole stack.
    x = jnp.transpose(sen_embeddings[:, :t_eff], (1, 0, 2))

    for layer in params["lstm"]:
        din = x.shape[-1]
        # Hoisted input projection for BOTH directions: one MXU-friendly GEMM.
        gin = _run_linear(x.reshape(t_eff * B, din), layer["wih"], layer["b"])
        gin = gin.reshape(t_eff, B, 8 * Hp)
        # Fused bidirectional recurrence (time loop inside the kernel).
        x = _run_bilstm(lens_b1, gin, layer["whh"], Hp, t_eff)   # [T_eff, B, 2*Hp]

    # unpad + concat valid timesteps (static lengths -> static shapes)
    rows = [x[:int(lens_np[b]), b, :] for b in range(B)]
    sentence = jnp.concatenate(rows, axis=0)                     # [Ntot, 2*Hp]

    return _run_head(sentence, params["w1"], params["b1"],
                     params["w2"], params["b2"], params["num_classes"])


# ----------------------------------------------------------------------------
# Parameter init (PyTorch-equivalent shapes, packed into padded/fused layout)
# ----------------------------------------------------------------------------
def _pad_gate_cols(w, H, Hp):
    """[din, 4H] -> [din, 4Hp]; gate k's real cols land at [k*Hp, k*Hp+H)."""
    out = jnp.zeros((w.shape[0], 4 * Hp), w.dtype)
    for k in range(4):
        out = out.at[:, k * Hp:k * Hp + H].set(w[:, k * H:(k + 1) * H])
    return out


def _embed_rows_2h(w, H, Hp):
    """[2H, n] -> [2Hp, n]; fwd rows at [0,H), bwd rows at [Hp, Hp+H)."""
    out = jnp.zeros((2 * Hp, w.shape[1]), w.dtype)
    out = out.at[0:H].set(w[0:H])
    out = out.at[Hp:Hp + H].set(w[H:2 * H])
    return out


def init_params(key, input_size, hidden, num_classes, layers):
    H = hidden
    Hp = _round_up(H, 128)
    Cp = _round_up(num_classes, 128)
    stdv = 1.0 / math.sqrt(H)

    def uni(k, shape, s):
        return jax.random.uniform(k, shape, jnp.float32, -s, s)

    params = {"hidden": H, "hidden_pad": Hp, "num_classes": num_classes, "lstm": []}

    for li in range(layers):
        din_real = input_size if li == 0 else 2 * H
        din_pad = input_size if li == 0 else 2 * Hp
        wih_both = jnp.zeros((din_pad, 8 * Hp), jnp.float32)
        b_both = jnp.zeros((1, 8 * Hp), jnp.float32)
        whh_stack = jnp.zeros((2, Hp, 4 * Hp), jnp.float32)
        for d in range(2):
            key, k1, k2, k3, k4 = jax.random.split(key, 5)
            wih = uni(k1, (din_real, 4 * H), stdv)    # W_ih^T
            whh = uni(k2, (H, 4 * H), stdv)           # W_hh^T
            bias = uni(k3, (4 * H,), stdv) + uni(k4, (4 * H,), stdv)  # b_ih + b_hh

            wih_rows = wih if li == 0 else _embed_rows_2h(wih, H, Hp)
            wih_p = _pad_gate_cols(wih_rows, H, Hp)                    # [din_pad, 4Hp]
            whh_p = jnp.zeros((Hp, 4 * Hp), jnp.float32
                              ).at[:H].set(_pad_gate_cols(whh, H, Hp))
            b_p = _pad_gate_cols(bias.reshape(1, -1), H, Hp)           # [1, 4Hp]

            wih_both = wih_both.at[:, d * 4 * Hp:(d + 1) * 4 * Hp].set(wih_p)
            b_both = b_both.at[:, d * 4 * Hp:(d + 1) * 4 * Hp].set(b_p)
            whh_stack = whh_stack.at[d].set(whh_p)
        params["lstm"].append({"wih": wih_both.astype(jnp.bfloat16),
                               "b": b_both,
                               "whh": whh_stack.astype(jnp.bfloat16)})

    key, k1, k2, k3, k4 = jax.random.split(key, 5)
    s1 = 1.0 / math.sqrt(2 * H)
    s2 = 1.0 / math.sqrt(H)
    w1 = uni(k1, (2 * H, H), s1)
    b1 = uni(k2, (H,), s1)
    w2 = uni(k3, (H, num_classes), s2)
    b2 = uni(k4, (num_classes,), s2)

    w1_p = jnp.zeros((2 * Hp, Hp), jnp.float32).at[:, :H].set(_embed_rows_2h(w1, H, Hp))
    b1_p = jnp.zeros((1, Hp), jnp.float32).at[0, :H].set(b1)
    w2_p = jnp.zeros((Hp, Cp), jnp.float32).at[:H, :num_classes].set(w2)
    b2_p = jnp.zeros((1, Cp), jnp.float32).at[0, :num_classes].set(b2)

    params["w1"] = w1_p.astype(jnp.bfloat16)
    params["b1"] = b1_p
    params["w2"] = w2_p.astype(jnp.bfloat16)
    params["b2"] = b2_p
    return params


# ----------------------------------------------------------------------------
if __name__ == "__main__":
    B, T = 2, 8
    INPUT_SIZE, HIDDEN, CLASSES, LAYERS = 16, 32, 5, 2

    key = jax.random.PRNGKey(0)
    pkey, xkey = jax.random.split(key)
    params = init_params(pkey, INPUT_SIZE, HIDDEN, CLASSES, LAYERS)

    sen_embeddings = jax.random.normal(xkey, (B, T, INPUT_SIZE), jnp.float32)
    sen_lens = np.array([8, 5], dtype=np.int32)   # CPU lengths, like torch

    out = lstm_module_forward(params, sen_embeddings, sen_lens)
    out = jax.block_until_ready(out)
    assert out.shape == (int(sen_lens.sum()), CLASSES)
    assert bool(jnp.all(jnp.isfinite(out)))
    print("KERNEL_OK")
</pallas_src>

<mosaic_0001>
module attributes {stable_mosaic.version = 11 : i64} {
  func.func @_matmul_bias_kernel(%arg0: i32, %arg1: memref<16x16xf32, #tpu.memory_space<vmem>>, %arg2: memref<16x1024xbf16, #tpu.memory_space<vmem>>, %arg3: memref<1x1024xf32, #tpu.memory_space<vmem>>, %arg4: memref<16x1024xf32, #tpu.memory_space<vmem>>) attributes {dimension_semantics = [#tpu.dimension_semantics<parallel>], iteration_bounds = array<i64: 1>, scalar_prefetch = 0 : i64, scratch_operands = 0 : i64, tpu.core_type = #tpu.core_type<tc>, window_params = [{transform_indices = @transform_0, window_bounds = array<i64: 16, 16>}, {pipeline_mode = #tpu.pipeline_mode<synchronous>, transform_indices = @transform_1, window_bounds = array<i64: 16, 1024>}, {pipeline_mode = #tpu.pipeline_mode<synchronous>, transform_indices = @transform_2, window_bounds = array<i64: 1, 1024>}, {transform_indices = @transform_3, window_bounds = array<i64: 16, 1024>}]} {
    %c0 = arith.constant 0 : index
    %c0_0 = arith.constant 0 : index
    %0 = vector.load %arg1[%c0, %c0_0] : memref<16x16xf32, #tpu.memory_space<vmem>>, vector<16x16xf32>
    %1 = arith.truncf %0 : vector<16x16xf32> to vector<16x16xbf16>
    %c0_1 = arith.constant 0 : index
    %c0_2 = arith.constant 0 : index
    %2 = vector.load %arg2[%c0_1, %c0_2] : memref<16x1024xbf16, #tpu.memory_space<vmem>>, vector<16x1024xbf16>
    %cst = arith.constant dense<0.000000e+00> : vector<16x1024xf32>
    %3 = tpu.matmul %1, %2, %cst {dimension_numbers = #tpu.dot_dimension_numbers<[1], [0], [0], [1], [0, 0, 1, 1], [], []>} : vector<16x16xbf16>, vector<16x1024xbf16>, vector<16x1024xf32> -> vector<16x1024xf32>
    %c0_3 = arith.constant 0 : index
    %c0_4 = arith.constant 0 : index
    %4 = vector.load %arg3[%c0_3, %c0_4] : memref<1x1024xf32, #tpu.memory_space<vmem>>, vector<1x1024xf32>
    %5 = vector.broadcast %4 : vector<1x1024xf32> to vector<16x1024xf32>
    %6 = arith.addf %3, %5 : vector<16x1024xf32>
    %c0_5 = arith.constant 0 : index
    %c0_6 = arith.constant 0 : index
    %7 = vector.load %arg4[%c0_5, %c0_6] : memref<16x1024xf32, #tpu.memory_space<vmem>>, vector<16x1024xf32>
    tpu.vector_store %arg4[%c0_5, %c0_6], %6 {strides = array<i32>} : memref<16x1024xf32, #tpu.memory_space<vmem>>, vector<16x1024xf32>,
    return
  }
  func.func @transform_0(%arg0: i32) -> (i32, i32) {
    %c0_i32 = arith.constant 0 : i32
    %c0_i32_0 = arith.constant 0 : i32
    return %arg0, %c0_i32 : i32, i32
  }
  func.func @transform_1(%arg0: i32) -> (i32, i32) {
    %c0_i32 = arith.constant 0 : i32
    %c0_i32_0 = arith.constant 0 : i32
    %c0_i32_1 = arith.constant 0 : i32
    return %c0_i32, %c0_i32_0 : i32, i32
  }
  func.func @transform_2(%arg0: i32) -> (i32, i32) {
    %c0_i32 = arith.constant 0 : i32
    %c0_i32_0 = arith.constant 0 : i32
    %c0_i32_1 = arith.constant 0 : i32
    return %c0_i32, %c0_i32_0 : i32, i32
  }
  func.func @transform_3(%arg0: i32) -> (i32, i32) {
    %c0_i32 = arith.constant 0 : i32
    %c0_i32_0 = arith.constant 0 : i32
    return %arg0, %c0_i32 : i32, i32
  }
}

</mosaic_0001>

<llo_original>
// kernel: tpu_custom_call.1
$region0: #{tpu_custom_call.1}
  #allocation0 [shape = 'u32[]', space=smem, size = 0x4, offset = 0x4, fixed_abs, tag = 'smem constant byte address 0x4 - core index']
  #allocation1 [shape = 'u32[72,128]{1,0:T(1,128)}', space=vmem, size = 0x9000, scoped, tag = 'internal scratch']
  %s0 = inlined_call_operand.hbm [shape: f32[16,16], index: 0, kind: input, shape index: {}]
  %s1 = inlined_call_operand.hbm [shape: bf16[16,1024], index: 1, kind: input, shape index: {}]
  %s2 = inlined_call_operand.hbm [shape: f32[1,1024], index: 2, kind: input, shape index: {}]
  %s3 = inlined_call_operand.hbm [shape: f32[16,1024], index: 3, kind: output, shape index: {}]
  %s4 = sld [smem:[#allocation0]]
  $region34: #{tpu_custom_call.1} parent=0
    _
  %s6 = ssub.s32 1, %s4
  %s7 = scalar_select 0, %s6, %s4
  $region1: #{tpu_custom_call.1} parent=0
    #allocation2 [shape = 'u8[8192]{0}', space=vmem, size = 0x2000, scoped, tag = 'input window, operand 0, single buffered']
    #allocation3 [shape = 's32[1]{0}', space=sflag, size = 0x4, scoped, tag = 'scoped memory for tpu_custom_call.1']
    #allocation4 [shape = 's32[1]{0}', space=sflag, size = 0x4, scoped, tag = 'scoped memory for tpu_custom_call.1']
    #allocation5 [shape = 'u8[32768]{0}', space=vmem, size = 0x8000, scoped, tag = 'input window, operand 1, single buffered']
    #allocation6 [shape = 's32[1]{0}', space=sflag, size = 0x4, scoped, tag = 'scoped memory for tpu_custom_call.1']
    #allocation7 [shape = 'u8[4096]{0}', space=vmem, size = 0x1000, scoped, tag = 'input window, operand 2, single buffered']
    #allocation8 [shape = 'u8[65536]{0}', space=vmem, size = 0x10000, scoped, tag = 'output window, operand 0, single buffered']
    %8 = vsyncpa [#allocation3], 0
    %9 = vsyncpa [#allocation6], 0
    %10 = vsyncpa [#allocation4], 0
    // Predicated region
    $region2: #{tpu_custom_call.1} parent=1 // pred_check
      _
    $region3: #{tpu_custom_call.1} parent=1 // pred_check_branch
      %12 = sbr.rel (0) target = $region5
    $region4: #{tpu_custom_call.1} parent=1 // pred_region
      %14 = vsyncadd [#allocation3], 0
      %s15 = sshll.u32 %s0, 4
      %s16 = int_to_ptr.hbm [resolvable:$true] %s15
      %s17 = sshll.u32 [#allocation2], 4
      %s18 = int_to_ptr.vmem [resolvable:$true] %s17
      %23 = dma.hbm_to_vmem [thread:$0]  %s16, 256, %s18, [#allocation3], 128, 128, 8
    $region5: #{tpu_custom_call.1} parent=1 // pred_fallthru
      _
    // Predicated region
    $region6: #{tpu_custom_call.1} parent=1 // pred_check
      _
    $region7: #{tpu_custom_call.1} parent=1 // pred_check_branch
      %25 = sbr.rel (0) target = $region9
    $region8: #{tpu_custom_call.1} parent=1 // pred_region
      %27 = vsyncadd [#allocation6], 0
      %s28 = sshll.u32 %s1, 4
      %s29 = int_to_ptr.hbm [resolvable:$true] %s28
      %s30 = sshll.u32 [#allocation5], 4
      %s31 = int_to_ptr.vmem [resolvable:$true] %s30
      %36 = dma.hbm_to_vmem [thread:$0]  %s29, 1024, %s31, [#allocation6], 512, 512, 32
    $region9: #{tpu_custom_call.1} parent=1 // pred_fallthru
      _
    // Predicated region
    $region10: #{tpu_custom_call.1} parent=1 // pred_check
      _
    $region11: #{tpu_custom_call.1} parent=1 // pred_check_branch
      %38 = sbr.rel (0) target = $region13
    $region12: #{tpu_custom_call.1} parent=1 // pred_region
      %40 = vsyncadd [#allocation6], 0
      %s42 = sshll.u32 %s2, 4
      %s43 = int_to_ptr.hbm [resolvable:$true] %s42
      %s44 = sshll.u32 [#allocation7], 4
      %s45 = int_to_ptr.vmem [resolvable:$true] %s44
      %47 = dma.hbm_to_vmem [thread:$0]  %s43, 128, %s45, [#allocation6]
    $region13: #{tpu_custom_call.1} parent=1 // pred_fallthru
      _
    // Predicated region
    $region14: #{tpu_custom_call.1} parent=1 // pred_check
      _
    $region15: #{tpu_custom_call.1} parent=1 // pred_check_branch
      %49 = sbr.rel (0) target = $region17
    $region16: #{tpu_custom_call.1} parent=1 // pred_region
      %51 = dma.done [#allocation3], 256
    $region17: #{tpu_custom_call.1} parent=1 // pred_fallthru
      _
    // Predicated region
    $region18: #{tpu_custom_call.1} parent=1 // pred_check
      _
    $region19: #{tpu_custom_call.1} parent=1 // pred_check_branch
      %53 = sbr.rel (0) target = $region21
    $region20: #{tpu_custom_call.1} parent=1 // pred_region
      %55 = dma.done [#allocation6], 1024
    $region21: #{tpu_custom_call.1} parent=1 // pred_fallthru
      _
    // Predicated region
    $region22: #{tpu_custom_call.1} parent=1 // pred_check
      _
    $region23: #{tpu_custom_call.1} parent=1 // pred_check_branch
      %57 = sbr.rel (0) target = $region25
    $region24: #{tpu_custom_call.1} parent=1 // pred_region
      %59 = dma.done [#allocation6], 128
    $region25: #{tpu_custom_call.1} parent=1 // pred_fallthru
      _
    %v61 = vld [vmem:[#allocation2] sm:$0xff]
    %v62 = vld [vmem:[#allocation2 + $0x8] sm:$0xff]
    %v63 = vpack.c.bf16 %v62, %v61
    %v64 = vld [vmem:[#allocation5] sm:$0xff]
    %v65 = vld [vmem:[#allocation5 + $0x8] sm:$0xff]
    %v66 = vld [vmem:[#allocation5 + $0x10] sm:$0xff]
    %v67 = vld [vmem:[#allocation5 + $0x18] sm:$0xff]
    %v68 = vld [vmem:[#allocation5 + $0x20] sm:$0xff]
    %v69 = vld [vmem:[#allocation5 + $0x28] sm:$0xff]
    %v70 = vld [vmem:[#allocation5 + $0x30] sm:$0xff]
    %v71 = vld [vmem:[#allocation5 + $0x38] sm:$0xff]
    %v72 = vld [vmem:[#allocation7] sm:$0xff]
    %v74 = vperm.slane %v72, 0
    %v75 = vperm.slane %v72, 1
    %v76 = vperm.slane %v72, 2
    %v77 = vperm.slane %v72, 3
    %v78 = vperm.slane %v72, 4
    %v79 = vperm.slane %v72, 5
    %v80 = vperm.slane %v72, 6
    %v81 = vperm.slane %v72, 7
    %v98 = vunpack.c.l.b16 %v64
    %v99 = vunpack.c.h.b16 %v64
    %v100 = vunpack.c.l.b16 %v65
    %v101 = vunpack.c.h.b16 %v65
    %v102 = vunpack.c.l.b16 %v66
    %v103 = vunpack.c.h.b16 %v66
    %v104 = vunpack.c.l.b16 %v67
    %v105 = vunpack.c.h.b16 %v67
    %v106 = vunpack.c.l.b16 %v68
    %v107 = vunpack.c.h.b16 %v68
    %v108 = vunpack.c.l.b16 %v69
    %v109 = vunpack.c.h.b16 %v69
    %v110 = vunpack.c.l.b16 %v70
    %v111 = vunpack.c.h.b16 %v70
    %v112 = vunpack.c.l.b16 %v71
    %v113 = vunpack.c.h.b16 %v71
    %v114 = vpack.c.b16 %v106, %v98
    %v115 = vpack.c.b16 %v107, %v99
    %v116 = vpack.c.b16 %v108, %v100
    %v117 = vpack.c.b16 %v109, %v101
    %v118 = vpack.c.b16 %v110, %v102
    %v119 = vpack.c.b16 %v111, %v103
    %v120 = vpack.c.b16 %v112, %v104
    %v121 = vpack.c.b16 %v113, %v105
    %vm130 = vcmask 130048
    %v132 = vsel %vm130, %v63, 0
    %134 = vmatpush.bf16.msra.mxu0 0
    %135 = vmatpush.bf16.msra.mxu0 0
    %136 = vmatpush.bf16.msra.mxu0 0
    %137 = vmatpush.bf16.msra.mxu0 0
    %138 = vmatpush.bf16.msra.mxu0 0
    %139 = vmatpush.bf16.msra.mxu0 0
    %140 = vmatpush.bf16.msra.mxu0 0
    %141 = vmatpush.bf16.msra.mxu0 %v114
    %142 = vmatmul.bf16.gmra.mxu0 %v132
    %v143 = vpop.f32.mrf.mxu0
    %v144 = vadd.f32 %v74, %v143
    %v145 = vpop.f32.mrf.mxu0
    %v146 = vadd.f32 %v74, %v145
    %147 = vdwg.mxu0
    %148 = vmatpush.bf16.msra.mxu0 0
    %149 = vmatpush.bf16.msra.mxu0 0
    %150 = vmatpush.bf16.msra.mxu0 0
    %151 = vmatpush.bf16.msra.mxu0 0
    %152 = vmatpush.bf16.msra.mxu0 0
    %153 = vmatpush.bf16.msra.mxu0 0
    %154 = vmatpush.bf16.msra.mxu0 0
    %155 = vmatpush.bf16.msra.mxu0 %v115
    %156 = vmatmul.bf16.gmra.mxu0 %v132
    %v157 = vpop.f32.mrf.mxu0
    %v158 = vadd.f32 %v75, %v157
    %v159 = vpop.f32.mrf.mxu0
    %v160 = vadd.f32 %v75, %v159
    %161 = vdwg.mxu0
    %162 = vmatpush.bf16.msra.mxu0 0
    %163 = vmatpush.bf16.msra.mxu0 0
    %164 = vmatpush.bf16.msra.mxu0 0
    %165 = vmatpush.bf16.msra.mxu0 0
    %166 = vmatpush.bf16.msra.mxu0 0
    %167 = vmatpush.bf16.msra.mxu0 0
    %168 = vmatpush.bf16.msra.mxu0 0
    %169 = vmatpush.bf16.msra.mxu0 %v116
    %170 = vmatmul.bf16.gmra.mxu0 %v132
    %v171 = vpop.f32.mrf.mxu0
    %v172 = vadd.f32 %v76, %v171
    %v173 = vpop.f32.mrf.mxu0
    %v174 = vadd.f32 %v76, %v173
    %175 = vdwg.mxu0
    %176 = vmatpush.bf16.msra.mxu0 0
    %177 = vmatpush.bf16.msra.mxu0 0
    %178 = vmatpush.bf16.msra.mxu0 0
    %179 = vmatpush.bf16.msra.mxu0 0
    %180 = vmatpush.bf16.msra.mxu0 0
    %181 = vmatpush.bf16.msra.mxu0 0
    %182 = vmatpush.bf16.msra.mxu0 0
    %183 = vmatpush.bf16.msra.mxu0 %v117
    %184 = vmatmul.bf16.gmra.mxu0 %v132
    %v185 = vpop.f32.mrf.mxu0
    %v186 = vadd.f32 %v77, %v185
    %v187 = vpop.f32.mrf.mxu0
    %v188 = vadd.f32 %v77, %v187
    %189 = vdwg.mxu0
    %190 = vmatpush.bf16.msra.mxu0 0
    %191 = vmatpush.bf16.msra.mxu0 0
    %192 = vmatpush.bf16.msra.mxu0 0
    %193 = vmatpush.bf16.msra.mxu0 0
    %194 = vmatpush.bf16.msra.mxu0 0
    %195 = vmatpush.bf16.msra.mxu0 0
    %196 = vmatpush.bf16.msra.mxu0 0
    %197 = vmatpush.bf16.msra.mxu0 %v118
    %198 = vmatmul.bf16.gmra.mxu0 %v132
    %v199 = vpop.f32.mrf.mxu0
    %v200 = vadd.f32 %v78, %v199
    %v201 = vpop.f32.mrf.mxu0
    %v202 = vadd.f32 %v78, %v201
    %203 = vdwg.mxu0
    %204 = vmatpush.bf16.msra.mxu0 0
    %205 = vmatpush.bf16.msra.mxu0 0
    %206 = vmatpush.bf16.msra.mxu0 0
    %207 = vmatpush.bf16.msra.mxu0 0
    %208 = vmatpush.bf16.msra.mxu0 0
    %209 = vmatpush.bf16.msra.mxu0 0
    %210 = vmatpush.bf16.msra.mxu0 0
    %211 = vmatpush.bf16.msra.mxu0 %v119
    %212 = vmatmul.bf16.gmra.mxu0 %v132
    %v213 = vpop.f32.mrf.mxu0
    %v214 = vadd.f32 %v79, %v213
    %v215 = vpop.f32.mrf.mxu0
    %v216 = vadd.f32 %v79, %v215
    %217 = vdwg.mxu0
    %218 = vmatpush.bf16.msra.mxu0 0
    %219 = vmatpush.bf16.msra.mxu0 0
    %220 = vmatpush.bf16.msra.mxu0 0
    %221 = vmatpush.bf16.msra.mxu0 0
    %222 = vmatpush.bf16.msra.mxu0 0
    %223 = vmatpush.bf16.msra.mxu0 0
    %224 = vmatpush.bf16.msra.mxu0 0
    %225 = vmatpush.bf16.msra.mxu0 %v120
    %226 = vmatmul.bf16.gmra.mxu0 %v132
    %v227 = vpop.f32.mrf.mxu0
    %v228 = vadd.f32 %v80, %v227
    %v229 = vpop.f32.mrf.mxu0
    %v230 = vadd.f32 %v80, %v229
    %231 = vdwg.mxu0
    %232 = vmatpush.bf16.msra.mxu0 0
    %233 = vmatpush.bf16.msra.mxu0 0
    %234 = vmatpush.bf16.msra.mxu0 0
    %235 = vmatpush.bf16.msra.mxu0 0
    %236 = vmatpush.bf16.msra.mxu0 0
    %237 = vmatpush.bf16.msra.mxu0 0
    %238 = vmatpush.bf16.msra.mxu0 0
    %239 = vmatpush.bf16.msra.mxu0 %v121
    %240 = vmatmul.bf16.gmra.mxu0 %v132
    %v241 = vpop.f32.mrf.mxu0
    %v242 = vadd.f32 %v81, %v241
    %v243 = vpop.f32.mrf.mxu0
    %v244 = vadd.f32 %v81, %v243
    %245 = vdwg.mxu0
    %246 = vst [vmem:[#allocation8] sm:$0xff] %v144
    %247 = vst [vmem:[#allocation8 + $0x8] sm:$0xff] %v158
    %248 = vst [vmem:[#allocation8 + $0x10] sm:$0xff] %v172
    %249 = vst [vmem:[#allocation8 + $0x18] sm:$0xff] %v186
    %250 = vst [vmem:[#allocation8 + $0x20] sm:$0xff] %v200
    %251 = vst [vmem:[#allocation8 + $0x28] sm:$0xff] %v214
    %252 = vst [vmem:[#allocation8 + $0x30] sm:$0xff] %v228
    %253 = vst [vmem:[#allocation8 + $0x38] sm:$0xff] %v242
    %254 = vst [vmem:[#allocation8 + $0x40] sm:$0xff] %v146
    %255 = vst [vmem:[#allocation8 + $0x48] sm:$0xff] %v160
    %256 = vst [vmem:[#allocation8 + $0x50] sm:$0xff] %v174
    %257 = vst [vmem:[#allocation8 + $0x58] sm:$0xff] %v188
    %258 = vst [vmem:[#allocation8 + $0x60] sm:$0xff] %v202
    %259 = vst [vmem:[#allocation8 + $0x68] sm:$0xff] %v216
    %260 = vst [vmem:[#allocation8 + $0x70] sm:$0xff] %v230
    %261 = vst [vmem:[#allocation8 + $0x78] sm:$0xff] %v244
    // Predicated region
    $region26: #{tpu_custom_call.1} parent=1 // pred_check
      _
    $region27: #{tpu_custom_call.1} parent=1 // pred_check_branch
      %263 = sbr.rel (0) target = $region29
    $region28: #{tpu_custom_call.1} parent=1 // pred_region
      %265 = vsyncadd [#allocation4], 0
      %s266 = sshll.u32 [#allocation8], 4
      %s267 = int_to_ptr.vmem [resolvable:$true] %s266
      %s268 = sshll.u32 %s3, 4
      %s269 = int_to_ptr.hbm [resolvable:$true] %s268
      %274 = dma.vmem_to_hbm [thread:$0]  %s267, 2048, %s269, [#allocation4], 1024, 1024, 64
    $region29: #{tpu_custom_call.1} parent=1 // pred_fallthru
      _
    // Predicated region
    $region30: #{tpu_custom_call.1} parent=1 // pred_check
      _
    $region31: #{tpu_custom_call.1} parent=1 // pred_check_branch
      %276 = sbr.rel (0) target = $region33
    $region32: #{tpu_custom_call.1} parent=1 // pred_region
      %278 = dma.done [#allocation4], 2048
    $region33: #{tpu_custom_call.1} parent=1 // pred_fallthru
      _
    %279 = vsyncpa [#allocation3], 1
    %280 = vsyncpa [#allocation6], 1
    %281 = vsyncpa [#allocation4], 1

</llo_original>
